<compile_context>
chip_gen: v7x
topology: tpu7x:2x2x1
jax: 0.10.0
libtpu: 0.0.40
codegen_flags: <defaults>
</compile_context>

<pallas_src>
import jax
import jax.numpy as jnp
from jax.experimental import pallas as pl
from jax.experimental.pallas import tpu as pltpu

LANE = 128


def _round_up(n, m):
    return ((n + m - 1) // m) * m


def _multi_head_kernel(x_ref, w_ref, b_ref, out_ref):
    # One fused matmul for all heads: (TB, F) @ (F, P) -> (TB, P) in f32.
    acc = jnp.dot(x_ref[...], w_ref[...], preferred_element_type=jnp.float32)
    acc = acc + b_ref[...].astype(jnp.float32)        # (TB, P) + (1, P) broadcast
    out_ref[...] = acc.astype(out_ref.dtype)


def fuse_multi_head_params(weights, biases, *, lane_multiple=LANE):
    """Fuse per-head (F, O) weights / (O,) biases into a single lane-dense
    (F, P) weight and (1, P) bias with P = round_up(num_heads*O, 128).

    Call ONCE at module-init time (outside the jitted forward) so the concat
    and zero-pad are not re-materialized every step."""
    num_heads = len(weights)
    assert num_heads == len(biases) and num_heads >= 1
    feat, out_dim = weights[0].shape
    assert all(w.shape == (feat, out_dim) for w in weights)

    w_cat = jnp.concatenate(list(weights), axis=1)                              # (F, H*O)
    b_cat = jnp.concatenate([jnp.asarray(b).reshape(1, -1) for b in biases], 1)  # (1, H*O)

    total = num_heads * out_dim
    padded = _round_up(total, lane_multiple)
    if padded != total:     # lane-dense output slab: pad with zero columns
        w_cat = jnp.pad(w_cat, ((0, 0), (0, padded - total)))
        b_cat = jnp.pad(b_cat, ((0, 0), (0, padded - total)))
    return w_cat, b_cat


def _default_vmem_budget_bytes():
    # Generation-aware budget: ~half of physical VMEM, capped at 48 MiB so the
    # working set stays comfortably inside v7x's 64 MiB per-TC VMEM while letting
    # v5e/v6e (128 MiB) run much larger batch tiles than the scoped default.
    try:
        cap = int(pltpu.get_tpu_info().vmem_capacity_bytes)
    except Exception:
        cap = 64 << 20          # conservative fallback (v7x per-TC)
    return max(8 << 20, min(48 << 20, cap // 2))


def multi_head_forward_fused(x, w_fused, b_fused, *, num_heads, out_dim,
                             out_dtype=None, batch_tile=None,
                             vmem_budget_bytes=None):
    """MultiHead forward on pre-fused params.

    x:        (B, F) features from the shared phi Body.
    w_fused:  (F, P) lane-padded fused weight from fuse_multi_head_params.
    b_fused:  (1, P) lane-padded fused bias.

    Returns a tuple of num_heads arrays, each (B, out_dim)."""
    batch, feat = x.shape
    wf, padded_out = w_fused.shape
    assert wf == feat and b_fused.shape == (1, padded_out)
    assert num_heads * out_dim <= padded_out
    out_dtype = x.dtype if out_dtype is None else jnp.dtype(out_dtype)

    x_bytes = jnp.dtype(x.dtype).itemsize
    o_bytes = jnp.dtype(out_dtype).itemsize
    # Sublane multiple for the batch tile: 8 (f32), 16 (bf16), 32 (int8/fp8).
    row_mult = max(8, 32 // x_bytes)

    if vmem_budget_bytes is None:
        vmem_budget_bytes = _default_vmem_budget_bytes()

    # Resident (constant index_map) weight/bias: budget them as double-buffered.
    resident_bytes = 2 * (w_fused.size * w_fused.dtype.itemsize
                          + b_fused.size * b_fused.dtype.itemsize)
    # Streaming bytes per batch row (x tile in + out tile back), double-buffered.
    stream_row = feat * x_bytes + padded_out * o_bytes

    rows = _round_up(batch, row_mult)
    if batch_tile is None:
        avail = max(vmem_budget_bytes - resident_bytes, 2 * row_mult * stream_row)
        max_rows = max(row_mult, (avail // (2 * stream_row)) // row_mult * row_mult)
        batch_tile = int(min(4096, max_rows, rows))
        # Keep >=2 grid steps when the batch allows it so dimension_semantics
        # ("parallel",) actually shards the batch across both v7x TensorCores;
        # ~0.35us extra per step is noise for a mem-bound streaming kernel.
        if rows >= 2 * row_mult:
            batch_tile = min(batch_tile,
                             max(row_mult, (rows // 2) // row_mult * row_mult))
    assert batch_tile > 0 and batch_tile % 8 == 0

    padded_batch = _round_up(batch, batch_tile)
    if padded_batch != batch:
        x = jnp.pad(x, ((0, padded_batch - batch), (0, 0)))

    grid = (padded_batch // batch_tile,)

    # Explicit VMEM limit covering resident weight/bias + double-buffered tiles,
    # plus headroom for compiler-internal scratch.
    vmem_limit = int(resident_bytes + 2 * batch_tile * stream_row + (4 << 20))
    vmem_limit = max(vmem_limit, 16 << 20)

    cost = pl.CostEstimate(
        flops=2 * padded_batch * feat * padded_out,
        transcendentals=0,
        bytes_accessed=(padded_batch * feat * x_bytes
                        + w_fused.size * w_fused.dtype.itemsize
                        + b_fused.size * b_fused.dtype.itemsize
                        + padded_batch * padded_out * o_bytes))

    fused = pl.pallas_call(
        _multi_head_kernel,
        out_shape=jax.ShapeDtypeStruct((padded_batch, padded_out), out_dtype),
        grid=grid,
        in_specs=[
            pl.BlockSpec((batch_tile, feat), lambda i: (i, 0)),
            pl.BlockSpec((feat, padded_out), lambda i: (0, 0)),   # VMEM-resident
            pl.BlockSpec((1, padded_out), lambda i: (0, 0)),      # VMEM-resident
        ],
        out_specs=pl.BlockSpec((batch_tile, padded_out), lambda i: (i, 0)),
        compiler_params=pltpu.CompilerParams(
            dimension_semantics=("parallel",),      # megacore split on v7x
            vmem_limit_bytes=vmem_limit),
        cost_estimate=cost,
    )(x, w_fused, b_fused)

    fused = fused[:batch]
    return tuple(fused[:, h * out_dim:(h + 1) * out_dim]
                 for h in range(num_heads))


def multi_head_forward(x, weights, biases, **kwargs):
    """Convenience wrapper: fuses params then runs the fused forward.  Prefer
    calling fuse_multi_head_params once at init and multi_head_forward_fused
    per step so the concat/pad is not repeated every call."""
    w_fused, b_fused = fuse_multi_head_params(weights, biases)
    return multi_head_forward_fused(
        x, w_fused, b_fused,
        num_heads=len(weights), out_dim=weights[0].shape[1], **kwargs)


if __name__ == "__main__":
    # Small shapes consistent with the module:
    #   phi feature dim = 32, output_dim = 4, support_dim = 1,
    #   num_heads = 2 (MultiHead default), batch = 48 (exercises a multi-step grid).
    batch, feat, output_dim, support_dim, num_heads = 48, 32, 4, 1, 2
    o = output_dim * support_dim

    key = jax.random.PRNGKey(0)
    keys = jax.random.split(key, 1 + 2 * num_heads)
    kx, param_keys = keys[0], keys[1:]

    # Feature input (output of the shared phi Body).
    x = jax.random.normal(kx, (batch, feat), dtype=jnp.float32)

    # Per-head final-layer params; yadrl uses ops.uniform_init -> U(-3e-3, 3e-3).
    weights = [jax.random.uniform(param_keys[2 * i], (feat, o), jnp.float32,
                                  minval=-3e-3, maxval=3e-3)
               for i in range(num_heads)]
    biases = [jax.random.uniform(param_keys[2 * i + 1], (1, o), jnp.float32,
                                 minval=-3e-3, maxval=3e-3)
              for i in range(num_heads)]

    # Pre-fuse once ("module init"), then run the forward (f32 path).
    w_fused, b_fused = fuse_multi_head_params(weights, biases)
    outs = multi_head_forward_fused(x, w_fused, b_fused,
                                    num_heads=num_heads, out_dim=o)
    jax.block_until_ready(outs)

    # Reference check in plain JAX (MultiHead.forward returns a tuple).
    refs = tuple(x @ w + b for w, b in zip(weights, biases))
    assert len(outs) == num_heads
    for out, ref in zip(outs, refs):
        assert out.shape == (batch, o)
        assert jnp.allclose(out, ref, atol=1e-5)

    # bf16 streaming path (v6e/v7x): bf16 x/w/b, f32 accumulation + f32 output.
    xb = x.astype(jnp.bfloat16)
    wb, bb = fuse_multi_head_params([w.astype(jnp.bfloat16) for w in weights],
                                    [b.astype(jnp.bfloat16) for b in biases])
    outs_bf16 = multi_head_forward_fused(xb, wb, bb,
                                         num_heads=num_heads, out_dim=o,
                                         out_dtype=jnp.float32)
    jax.block_until_ready(outs_bf16)
    for out, ref in zip(outs_bf16, refs):
        assert out.shape == (batch, o)
        assert jnp.allclose(out, ref, atol=5e-3, rtol=5e-2)

    print("KERNEL_OK")
</pallas_src>

<mosaic_0001>
module attributes {stable_mosaic.version = 11 : i64} {
  func.func @_multi_head_kernel(%arg0: i32, %arg1: memref<24x32xf32, #tpu.memory_space<vmem>>, %arg2: memref<32x128xf32, #tpu.memory_space<vmem>>, %arg3: memref<1x128xf32, #tpu.memory_space<vmem>>, %arg4: memref<24x128xf32, #tpu.memory_space<vmem>>) attributes {dimension_semantics = [#tpu.dimension_semantics<parallel>], iteration_bounds = array<i64: 2>, scalar_prefetch = 0 : i64, scratch_operands = 0 : i64, tpu.core_type = #tpu.core_type<tc>, window_params = [{transform_indices = @transform_0, window_bounds = array<i64: 24, 32>}, {pipeline_mode = #tpu.pipeline_mode<synchronous>, transform_indices = @transform_1, window_bounds = array<i64: 32, 128>}, {pipeline_mode = #tpu.pipeline_mode<synchronous>, transform_indices = @transform_2, window_bounds = array<i64: 1, 128>}, {transform_indices = @transform_3, window_bounds = array<i64: 24, 128>}]} {
    %c0 = arith.constant 0 : index
    %c0_0 = arith.constant 0 : index
    %0 = vector.load %arg1[%c0, %c0_0] : memref<24x32xf32, #tpu.memory_space<vmem>>, vector<24x32xf32>
    %c0_1 = arith.constant 0 : index
    %c0_2 = arith.constant 0 : index
    %1 = vector.load %arg2[%c0_1, %c0_2] : memref<32x128xf32, #tpu.memory_space<vmem>>, vector<32x128xf32>
    %cst = arith.constant dense<0.000000e+00> : vector<24x128xf32>
    %2 = tpu.matmul %0, %1, %cst {dimension_numbers = #tpu.dot_dimension_numbers<[1], [0], [0], [1], [0, 0, 1, 1], [], []>} : vector<24x32xf32>, vector<32x128xf32>, vector<24x128xf32> -> vector<24x128xf32>
    %c0_3 = arith.constant 0 : index
    %c0_4 = arith.constant 0 : index
    %3 = vector.load %arg3[%c0_3, %c0_4] : memref<1x128xf32, #tpu.memory_space<vmem>>, vector<1x128xf32>
    %4 = vector.broadcast %3 : vector<1x128xf32> to vector<24x128xf32>
    %5 = arith.addf %2, %4 : vector<24x128xf32>
    %c0_5 = arith.constant 0 : index
    %c0_6 = arith.constant 0 : index
    %6 = vector.load %arg4[%c0_5, %c0_6] : memref<24x128xf32, #tpu.memory_space<vmem>>, vector<24x128xf32>
    tpu.vector_store %arg4[%c0_5, %c0_6], %5 {strides = array<i32>} : memref<24x128xf32, #tpu.memory_space<vmem>>, vector<24x128xf32>,
    return
  }
  func.func @transform_0(%arg0: i32) -> (i32, i32) {
    %c0_i32 = arith.constant 0 : i32
    %c0_i32_0 = arith.constant 0 : i32
    return %arg0, %c0_i32 : i32, i32
  }
  func.func @transform_1(%arg0: i32) -> (i32, i32) {
    %c0_i32 = arith.constant 0 : i32
    %c0_i32_0 = arith.constant 0 : i32
    %c0_i32_1 = arith.constant 0 : i32
    return %c0_i32, %c0_i32_0 : i32, i32
  }
  func.func @transform_2(%arg0: i32) -> (i32, i32) {
    %c0_i32 = arith.constant 0 : i32
    %c0_i32_0 = arith.constant 0 : i32
    %c0_i32_1 = arith.constant 0 : i32
    return %c0_i32, %c0_i32_0 : i32, i32
  }
  func.func @transform_3(%arg0: i32) -> (i32, i32) {
    %c0_i32 = arith.constant 0 : i32
    %c0_i32_0 = arith.constant 0 : i32
    return %arg0, %c0_i32 : i32, i32
  }
}

</mosaic_0001>

<llo_original>
// kernel: tpu_custom_call.1
$region0: #{tpu_custom_call.1}
  #allocation0 [shape = 'u32[]', space=smem, size = 0x4, offset = 0x4, fixed_abs, tag = 'smem constant byte address 0x4 - core index']
  #allocation1 [shape = 'u32[144,128]{1,0:T(1,128)}', space=vmem, size = 0x12000, scoped, tag = 'internal scratch']
  %s0 = inlined_call_operand.vmem [shape: f32[48,32], index: 0, kind: input, shape index: {}]
  %s1 = inlined_call_operand.vmem [shape: f32[32,128], index: 1, kind: input, shape index: {}]
  %s2 = inlined_call_operand.vmem [shape: f32[1,128], index: 2, kind: input, shape index: {}]
  %s3 = inlined_call_operand.hbm [shape: f32[48,128], index: 3, kind: output, shape index: {}]
  %s4 = sld [smem:[#allocation0]]
  $region45: #{tpu_custom_call.1} parent=0
    _
  %s6 = ssub.s32 1, %s4
  %s7 = scalar_select 0, %s6, %s4
  $region1: #{tpu_custom_call.1} parent=0
    #allocation2 [shape = 'u8[24576]{0}', space=vmem, size = 0x6000, scoped, tag = 'output window, operand 0']
    #allocation3 [shape = 's32[2]{0}', space=sflag, size = 0x8, scoped, tag = 'scoped memory for tpu_custom_call.1']
    %8 = vsyncpa [#allocation3], 0
    %s9 = scalar_lea.sflag [#allocation3], 1
    %10 = vsyncpa %s9, 0
    loop: start=0, step=1, limit=4
    $region2: #{tpu_custom_call.1} parent=1 // loop_pre_header
      _
    $region3: #{tpu_custom_call.1} parent=1 // loop_header
      %s12 = sphi 0, %s16
      %p13 = scmp.ge.s32.totalorder %s12, 4
      %s22 = sphi 0, %s24
      %s25 = sphi 0, %s22
      %s26 = sphi 0, %s25
      %s42 = sphi 0, %s26
      %s46 = sphi 0, %s46
      %s48 = sphi 0, %s46
      %s49 = sphi 0, %s48
      %s63 = sphi 0, %s49
      %s67 = sphi 0, %s67
      %s69 = sphi 0, %s67
      %s70 = sphi 0, %s69
      %s84 = sphi 0, %s70
      %s90 = sphi 0, %s92
      %s93 = sphi 0, %s90
      %s94 = sphi 0, %s93
      %s110 = sphi 0, %s94
    $region4: #{tpu_custom_call.1} parent=1 // loop_header_branch
      %15 = sbr.rel (%p13) target = $region8
    $region5: #{tpu_custom_call.1} parent=1 // loop_body
      %s17 = ssub.s32 %s12, 1
      %s18 = ssub.s32 %s12, 2
      %s19 = sadd.s32 %s12, 1
      %s20 = ssub.s32 %s12, %s19
      %p21 = scmp.eq.s32.totalorder %s20, 0
      %s23 = sadd.s32 %s22, 1
      %s24 = scalar_select %p21, %s22, %s23
      %p27 = pneg %p21
      %p28 = scmp.eq.s32.totalorder %s12, 1
      %p29 = por %p27, %p28
      %p30 = scmp.ne.s32.totalorder %s22, %s25
      %p31 = scmp.eq.s32.totalorder %s12, 0
      %p32 = por %p30, %p31
      %p33 = scmp.ne.s32.totalorder %s22, %s25
      %p34 = scmp.eq.s32.totalorder %s17, 1
      %p35 = por %p33, %p34
      %p36 = scmp.ne.s32.totalorder %s25, %s26
      %p37 = scmp.eq.s32.totalorder %s17, 0
      %p38 = por %p36, %p37
      %p39 = scmp.ne.s32.totalorder %s25, %s26
      %p40 = scmp.eq.s32.totalorder %s18, 1
      %p41 = por %p39, %p40
      %p43 = scmp.ne.s32.totalorder %s26, %s42
      %p44 = scmp.eq.s32.totalorder %s18, 0
      %p45 = por %p43, %p44
      %s47 = sadd.s32 %s46, 1
      %p50 = scmp.eq.s32.totalorder %s12, 1
      %p51 = scmp.ne.s32.totalorder %s46, %s48
      %p52 = scmp.eq.s32.totalorder %s12, 0
      %p53 = por %p51, %p52
      %p54 = scmp.ne.s32.totalorder %s46, %s48
      %p55 = scmp.eq.s32.totalorder %s17, 1
      %p56 = por %p54, %p55
      %p57 = scmp.ne.s32.totalorder %s48, %s49
      %p58 = scmp.eq.s32.totalorder %s17, 0
      %p59 = por %p57, %p58
      %p60 = scmp.ne.s32.totalorder %s48, %s49
      %p61 = scmp.eq.s32.totalorder %s18, 1
      %p62 = por %p60, %p61
      %p64 = scmp.ne.s32.totalorder %s49, %s63
      %p65 = scmp.eq.s32.totalorder %s18, 0
      %p66 = por %p64, %p65
      %s68 = sadd.s32 %s67, 1
      %p71 = scmp.eq.s32.totalorder %s12, 1
      %p72 = scmp.ne.s32.totalorder %s67, %s69
      %p73 = scmp.eq.s32.totalorder %s12, 0
      %p74 = por %p72, %p73
      %p75 = scmp.ne.s32.totalorder %s67, %s69
      %p76 = scmp.eq.s32.totalorder %s17, 1
      %p77 = por %p75, %p76
      %p78 = scmp.ne.s32.totalorder %s69, %s70
      %p79 = scmp.eq.s32.totalorder %s17, 0
      %p80 = por %p78, %p79
      %p81 = scmp.ne.s32.totalorder %s69, %s70
      %p82 = scmp.eq.s32.totalorder %s18, 1
      %p83 = por %p81, %p82
      %p85 = scmp.ne.s32.totalorder %s70, %s84
      %p86 = scmp.eq.s32.totalorder %s18, 0
      %p87 = por %p85, %p86
      %s88 = ssub.s32 %s12, %s19
      %p89 = scmp.eq.s32.totalorder %s88, 0
      %s91 = sadd.s32 %s90, 1
      %s92 = scalar_select %p89, %s90, %s91
      %p95 = pneg %p89
      %p96 = scmp.eq.s32.totalorder %s12, 1
      %p97 = por %p95, %p96
      %p98 = scmp.ne.s32.totalorder %s90, %s93
      %p99 = scmp.eq.s32.totalorder %s12, 0
      %p100 = por %p98, %p99
      %p101 = scmp.ne.s32.totalorder %s90, %s93
      %p102 = scmp.eq.s32.totalorder %s17, 1
      %p103 = por %p101, %p102
      %p104 = scmp.ne.s32.totalorder %s93, %s94
      %p105 = scmp.eq.s32.totalorder %s17, 0
      %p106 = por %p104, %p105
      %p107 = scmp.ne.s32.totalorder %s93, %s94
      %p108 = scmp.eq.s32.totalorder %s18, 1
      %p109 = por %p107, %p108
      %p111 = scmp.ne.s32.totalorder %s94, %s110
      %p112 = scmp.eq.s32.totalorder %s18, 0
      %p113 = por %p111, %p112
      %p114 = scmp.le.s32.totalorder 1, %s12
      %p115 = scmp.lt.s32.totalorder %s12, 3
      %p116 = pnand %p114, %p115
      %p117 = pneg %p116
      // Predicated region
      $region9: #{tpu_custom_call.1} parent=5 // pred_check
        _
      $region10: #{tpu_custom_call.1} parent=5 // pred_check_branch
        %119 = sbr.rel (%p116) target = $region12
      $region11: #{tpu_custom_call.1} parent=5 // pred_region
        %s120 = ssub.s32 %s12, 1
        // Predicated region
        $region13: #{tpu_custom_call.1} parent=11 // pred_check
          %p121 = pneg %p59
        $region14: #{tpu_custom_call.1} parent=11 // pred_check_branch
          %123 = sbr.rel (%p121) target = $region16
        $region15: #{tpu_custom_call.1} parent=11 // pred_region
          _
        $region16: #{tpu_custom_call.1} parent=11 // pred_fallthru
          _
        // Predicated region
        $region17: #{tpu_custom_call.1} parent=11 // pred_check
          %p124 = pneg %p80
        $region18: #{tpu_custom_call.1} parent=11 // pred_check_branch
          %126 = sbr.rel (%p124) target = $region20
        $region19: #{tpu_custom_call.1} parent=11 // pred_region
          _
        $region20: #{tpu_custom_call.1} parent=11 // pred_fallthru
          _
      $region12: #{tpu_custom_call.1} parent=5 // pred_fallthru
        _
      %p127 = scmp.lt.s32.totalorder %s12, 2
      // Predicated region
      $region21: #{tpu_custom_call.1} parent=5 // pred_check
        %p128 = pneg %p127
      $region22: #{tpu_custom_call.1} parent=5 // pred_check_branch
        %130 = sbr.rel (%p128) target = $region24
      $region23: #{tpu_custom_call.1} parent=5 // pred_region
        // Predicated region
        $region25: #{tpu_custom_call.1} parent=23 // pred_check
          %p131 = pneg %p32
        $region26: #{tpu_custom_call.1} parent=23 // pred_check_branch
          %133 = sbr.rel (%p131) target = $region28
        $region27: #{tpu_custom_call.1} parent=23 // pred_region
          %s134 = smul.u32 3, %s12
          %p135 = scmp.lt.s32.totalorder %s134, 5
          %s136 = scalar_select %p135, %s134, 5
          %s137 = smul.addr %s136, 8
          %s138 = scalar_lea.vmem %s0, %s137
          %s139 = smul.u32 3, %s12
        $region28: #{tpu_custom_call.1} parent=23 // pred_fallthru
          _
      $region24: #{tpu_custom_call.1} parent=5 // pred_fallthru
        _
      %p140 = scmp.le.s32.totalorder 1, %s12
      %p141 = scmp.lt.s32.totalorder %s12, 3
      %p142 = pnand %p140, %p141
      %p143 = pneg %p142
      // Predicated region
      $region29: #{tpu_custom_call.1} parent=5 // pred_check
        _
      $region30: #{tpu_custom_call.1} parent=5 // pred_check_branch
        %145 = sbr.rel (%p142) target = $region32
      $region31: #{tpu_custom_call.1} parent=5 // pred_region
        %s146 = ssub.s32 %s12, 1
        %s147 = smul.u32 3, %s17
        %p148 = scmp.lt.s32.totalorder %s147, 5
        %s149 = scalar_select %p148, %s147, 5
        %s150 = smul.addr %s149, 8
        %s151 = scalar_lea.vmem %s0, %s150
        %p152 = pneg %p38
        %p153 = pneg %p35
        %p154 = pneg %p59
        %p155 = pneg %p56
        %p156 = pneg %p80
        %p157 = pneg %p77
        %p158 = pneg %p106
        %p159 = pneg %p103
        %s160 = sand.u32 %s93, 1
        %s161 = scalar_lea.sflag [#allocation3], %s160
        %s162 = sand.u32 %s93, 1
        %s163 = smul.addr %s162, 24
        %s164 = scalar_lea.vmem [#allocation2], %s163
        %s165 = smul.u32 3, %s17
        %p166 = scmp.lt.s32.totalorder %s165, 5
        %s167 = scalar_select %p166, %s165, 5
        %s168 = smul.addr %s167, 8
        %s169 = scalar_lea.vmem %s0, %s168
        %s170 = smul.u32 3, %s17
        %s171 = smul.u32 3, %s17
        %v172 = vld [vmem:[%s169] sm:$0xff]
        %v173 = vld [vmem:[%s169 + $0x8] sm:$0xff]
        %v174 = vld [vmem:[%s169 + $0x10] sm:$0xff]
        %v175 = vld [vmem:[%s1] sm:$0xff]
        %v176 = vld [vmem:[%s1 + $0x8] sm:$0xff]
        %v177 = vld [vmem:[%s1 + $0x10] sm:$0xff]
        %v178 = vld [vmem:[%s1 + $0x18] sm:$0xff]
        %v179 = vld [vmem:[%s2] sm:$0x1]
        %v181 = vlaneseq
        %v182 = vshrl.u32 %v181, 7
        %v183 = vsub.s32 0, %v182
        %v184 = vrot.slane %v179, %v183
        %vm186 = vcmask 261120
        %v188 = vsel %vm186, %v172, 0
        %v191 = vsel %vm186, %v173, 0
        %v194 = vsel %vm186, %v174, 0
        %196 = vmatprep.subr.mxu0 0.0
        %197 = vmatpush1.msra.mxu0 %v175
        %198 = vmatprep.subr.mxu0 0.0
        %199 = vmatpush1.msra.mxu0 %v176
        %200 = vmatprep.subr.mxu0 0.0
        %201 = vmatpush1.msra.mxu0 %v177
        %202 = vmatprep.subr.mxu0 0.0
        %203 = vmatpush1.msra.mxu0 %v178
        %204 = vmatprep.subr.mxu0 0.0
        %205 = vmatpush1.msra.mxu0 0.0
        %206 = vmatprep.subr.mxu0 0.0
        %207 = vmatpush1.msra.mxu0 0.0
        %208 = vmatprep.subr.mxu0 0.0
        %209 = vmatpush1.msra.mxu0 0.0
        %210 = vmatprep.subr.mxu0 0.0
        %211 = vmatpush1.msra.mxu0 0.0
        %212 = vmatprep.subr.mxu0 0.0
        %213 = vmatpush1.msra.mxu0 0.0
        %214 = vmatprep.subr.mxu0 0.0
        %215 = vmatpush1.msra.mxu0 0.0
        %216 = vmatprep.subr.mxu0 0.0
        %217 = vmatpush1.msra.mxu0 0.0
        %218 = vmatprep.subr.mxu0 0.0
        %219 = vmatpush1.msra.mxu0 0.0
        %220 = vmatprep.subr.mxu0 0.0
        %221 = vmatpush1.msra.mxu0 0.0
        %222 = vmatprep.subr.mxu0 0.0
        %223 = vmatpush1.msra.mxu0 0.0
        %224 = vmatprep.subr.mxu0 0.0
        %225 = vmatpush1.msra.mxu0 0.0
        %226 = vmatprep.subr.mxu0 0.0
        %227 = vmatpush1.msra.mxu0 0.0
        %228 = vmatprep.subr.mxu0 0.0
        %229 = vmatpush1.msra.mxu0 0.0
        %230 = vmatprep.subr.mxu0 0.0
        %231 = vmatpush1.msra.mxu0 0.0
        %232 = vmatprep.subr.mxu0 0.0
        %233 = vmatpush1.msra.mxu0 0.0
        %234 = vmatprep.subr.mxu0 0.0
        %235 = vmatpush1.msra.mxu0 0.0
        %236 = vmatprep.subr.mxu0 0.0
        %237 = vmatpush1.msra.mxu0 0.0
        %238 = vmatprep.subr.mxu0 0.0
        %239 = vmatpush1.msra.mxu0 0.0
        %240 = vmatprep.subr.mxu0 0.0
        %241 = vmatpush1.msra.mxu0 0.0
        %242 = vmatprep.subr.mxu0 0.0
        %243 = vmatpush1.msra.mxu0 0.0
        %244 = vmatprep.subr.mxu0 0.0
        %245 = vmatpush1.msra.mxu0 0.0
        %246 = vmatprep.subr.mxu0 0.0
        %247 = vmatpush1.msra.mxu0 0.0
        %248 = vmatprep.subr.mxu0 0.0
        %249 = vmatpush1.msra.mxu0 0.0
        %250 = vmatprep.subr.mxu0 0.0
        %251 = vmatpush1.msra.mxu0 0.0
        %252 = vmatprep.subr.mxu0 0.0
        %253 = vmatpush1.msra.mxu0 0.0
        %254 = vmatprep.subr.mxu0 0.0
        %255 = vmatpush1.msra.mxu0 0.0
        %256 = vmatprep.subr.mxu0 0.0
        %257 = vmatpush1.msra.mxu0 0.0
        %258 = vmatprep.subr.mxu0 0.0
        %259 = vmatpush1.msra.mxu0 0.0
        %260 = vmatprep.mubr.f32.mxu0 0.0
        %261 = vmatmul.mubr.f32.gmra.mrb[0].mxu0 %v188
        %v262 = vpop.f32.mrb[0].mxu0
        %v263 = vadd.f32 %v184, %v262
        %v264 = vpop.f32.mrb[0].mxu0
        %265 = vmatprep.mubr.f32.mxu0 0.0
        %266 = vmatmul.mubr.f32.gmra.mrb[0].mxu0 %v191
        %v267 = vpop.f32.mrb[0].mxu0
        %v268 = vadd.f32 %v184, %v267
        %v269 = vpop.f32.mrb[0].mxu0
        %270 = vmatprep.mubr.f32.mxu0 0.0
        %271 = vmatmul.mubr.f32.gmra.mrb[0].mxu0 %v194
        %v272 = vpop.f32.mrb[0].mxu0
        %v273 = vadd.f32 %v184, %v272
        %v274 = vpop.f32.mrb[0].mxu0
        %275 = vdwg.mxu0
        %276 = vst [vmem:[%s164] sm:$0xff] %v263
        %277 = vst [vmem:[%s164 + $0x8] sm:$0xff] %v268
        %278 = vst [vmem:[%s164 + $0x10] sm:$0xff] %v273
        %s279 = sand.u32 %s93, 1
        %s280 = scalar_lea.sflag [#allocation3], %s279
        %s281 = sand.u32 %s93, 1
        %s282 = smul.addr %s281, 24
        %s283 = scalar_lea.vmem [#allocation2], %s282
        // Predicated region
        $region33: #{tpu_custom_call.1} parent=31 // pred_check
          %p284 = pneg %p103
        $region34: #{tpu_custom_call.1} parent=31 // pred_check_branch
          %286 = sbr.rel (%p284) target = $region36
        $region35: #{tpu_custom_call.1} parent=31 // pred_region
          %s287 = smul.u32 3, %s17
          %s289 = ssub.s32 384, 384
          %290 = vsyncadd %s280, %s289
          %s291 = smul.addr %s287, 128
          %s292 = scalar_lea.hbm %s3, %s291
          %s293 = sshll.u32 %s283, 4
          %s294 = int_to_ptr.vmem [resolvable:$true] %s293
          %299 = dma.vmem_to_hbm [thread:$0]  %s294, 384, %s292, %s280, 128, 128, 8
        $region36: #{tpu_custom_call.1} parent=31 // pred_fallthru
          _
      $region32: #{tpu_custom_call.1} parent=5 // pred_fallthru
        _
      %p300 = scmp.le.s32.totalorder 2, %s12
      // Predicated region
      $region37: #{tpu_custom_call.1} parent=5 // pred_check
        %p301 = pneg %p300
      $region38: #{tpu_custom_call.1} parent=5 // pred_check_branch
        %303 = sbr.rel (%p301) target = $region40
      $region39: #{tpu_custom_call.1} parent=5 // pred_region
        %s304 = ssub.s32 %s12, 2
        // Predicated region
        $region41: #{tpu_custom_call.1} parent=39 // pred_check
          %p305 = pneg %p109
        $region42: #{tpu_custom_call.1} parent=39 // pred_check_branch
          %307 = sbr.rel (%p305) target = $region44
        $region43: #{tpu_custom_call.1} parent=39 // pred_region
          %s308 = sand.u32 %s94, 1
          %s309 = scalar_lea.sflag [#allocation3], %s308
          %s310 = sand.u32 %s94, 1
          %s311 = smul.addr %s310, 24
          %s312 = scalar_lea.vmem [#allocation2], %s311
          %313 = dma.done %s309, 384
        $region44: #{tpu_custom_call.1} parent=39 // pred_fallthru
          _
      $region40: #{tpu_custom_call.1} parent=5 // pred_fallthru
        _
    $region6: #{tpu_custom_call.1} parent=1 // loop_footer
      %s16 = sadd.s32 1, %s12
    $region7: #{tpu_custom_call.1} parent=1 // loop_footer_branch
      %11 = sbr.rel target = $region3
    $region8: #{tpu_custom_call.1} parent=1 // loop_exit
      _
    %314 = vsyncpa [#allocation3], 1
    %s315 = scalar_lea.sflag [#allocation3], 1
    %316 = vsyncpa %s315, 1

</llo_original>
